<compile_context>
chip_gen: v7x
topology: tpu7x:2x2x1
jax: 0.10.0
libtpu: 0.0.40
codegen_flags: <defaults>
</compile_context>

<pallas_src>
import functools

import jax
import jax.numpy as jnp
from jax.experimental import pallas as pl
from jax.experimental.pallas import tpu as pltpu


_GELU_C = 0.7978845608028654  # sqrt(2/pi)


def _gelu_tanh(x):
    # TODO(synk): PyTorch nn.GELU() defaults to the exact erf formulation; the
    # tanh approximation is used here (erf is not guaranteed to lower in
    # Mosaic). Difference is O(1e-3) on activations.
    return 0.5 * x * (1.0 + jnp.tanh(_GELU_C * (x + 0.044715 * x * x * x)))


def _split_attention_kernel(k, out_dtype):
    """One batch element per grid step; everything stays in VMEM/vregs."""

    def kernel(x_ref, w1_ref, w2_ref, o_ref):
        # x_ref : (1, k, HW, c)   one batch element, splits-major, channels-last
        # w1_ref: (c, c)          mlp1 weight (y = x @ w1)
        # w2_ref: (k, c, c)       mlp2 weight, pre-split per k (y_j = x @ w2[j])
        # o_ref : (1, HW, c)
        xs = [x_ref[0, j] for j in range(k)]            # k x (HW, c)

        # a = sum over splits and spatial positions -> (1, c)
        total = xs[0]
        for j in range(1, k):
            total = total + xs[j]
        a = jnp.sum(total, axis=0, keepdims=True)

        # hat_a = mlp2(gelu(mlp1(a))); each split j kept as its own (1, c) row
        # so the softmax over k never needs a lane-crossing reshape.
        g = _gelu_tanh(jnp.dot(a, w1_ref[...], preferred_element_type=jnp.float32))
        logits = [jnp.dot(g, w2_ref[j], preferred_element_type=jnp.float32)
                  for j in range(k)]                     # k x (1, c)

        # softmax over the k splits (channel-wise)
        m = logits[0]
        for j in range(1, k):
            m = jnp.maximum(m, logits[j])
        exps = [jnp.exp(l - m) for l in logits]
        denom = exps[0]
        for j in range(1, k):
            denom = denom + exps[j]
        inv = 1.0 / denom                                # (1, c)

        # out = sum_j bar_a[j] * x[j]   ((1, c) broadcast over HW sublanes)
        acc = (exps[0] * inv) * xs[0]
        for j in range(1, k):
            acc = acc + (exps[j] * inv) * xs[j]
        o_ref[0] = acc.astype(out_dtype)

    return kernel


@functools.partial(jax.jit, static_argnames=("k",))
def split_attention(x_all, w1, w2, *, k):
    """Forward pass matching SplitAttention.forward.

    x_all: (b, k, h, w, c); w1: (c, c); w2: (c, k*c), both used as y = x @ W
    (i.e. transposed PyTorch Linear weights). Returns (b, h, w, c).
    """
    b, kk, h, w, c = x_all.shape
    assert kk == k
    hw = h * w
    x_r = x_all.reshape(b, k, hw, c)
    w2_r = w2.reshape(c, k, c).transpose(1, 0, 2)        # (k, c, c), split-major

    out = pl.pallas_call(
        _split_attention_kernel(k, x_all.dtype),
        out_shape=jax.ShapeDtypeStruct((b, hw, c), x_all.dtype),
        grid=(b,),
        in_specs=[
            pl.BlockSpec((1, k, hw, c), lambda n: (n, 0, 0, 0)),
            pl.BlockSpec((c, c), lambda n: (0, 0)),
            pl.BlockSpec((k, c, c), lambda n: (0, 0, 0)),
        ],
        out_specs=pl.BlockSpec((1, hw, c), lambda n: (n, 0, 0)),
        compiler_params=pltpu.CompilerParams(dimension_semantics=("parallel",)),
    )(x_r, w1, w2_r)
    return out.reshape(b, h, w, c)


def _reference(x_all, w1, w2, k):
    """Pure-JAX reference for correctness checking."""
    b, kk, h, w, c = x_all.shape
    x = x_all.reshape(b, kk, h * w, c)
    a = jnp.sum(x, axis=(1, 2))                                        # (b, c)
    hi = jax.lax.Precision.HIGHEST
    hat = jnp.dot(_gelu_tanh(jnp.dot(a, w1, precision=hi)), w2, precision=hi)
    bar = jax.nn.softmax(hat.reshape(b, k, c), axis=1)                 # (b, k, c)
    out = jnp.sum(bar[:, :, None, :] * x, axis=1)                      # (b, hw, c)
    return out.reshape(b, h, w, c)


if __name__ == "__main__":
    key = jax.random.PRNGKey(0)
    kx, k1, k2 = jax.random.split(key, 3)

    B, K, H, W, C = 2, 3, 8, 8, 128       # channel=128 keeps the lane axis full
    x = jax.random.normal(kx, (B, K, H, W, C), jnp.float32)
    s = 1.0 / C ** 0.5                    # PyTorch Linear default init range
    w1 = jax.random.uniform(k1, (C, C), jnp.float32, -s, s)
    w2 = jax.random.uniform(k2, (C, C * K), jnp.float32, -s, s)

    out = split_attention(x, w1, w2, k=K)
    out = jax.block_until_ready(out)

    assert out.shape == (B, H, W, C), out.shape
    ref = _reference(x, w1, w2, K)
    # Tolerance covers possible f32-on-MXU precision-mode differences between
    # Mosaic and the XLA reference; structural bugs would be O(0.1+).
    assert jnp.allclose(out, ref, atol=2e-2, rtol=2e-2), "mismatch vs JAX reference"

    print("KERNEL_OK")
</pallas_src>

<mosaic_0001>
module attributes {stable_mosaic.version = 11 : i64} {
  func.func @kernel(%arg0: i32, %arg1: memref<1x3x64x128xf32, #tpu.memory_space<vmem>>, %arg2: memref<128x128xf32, #tpu.memory_space<vmem>>, %arg3: memref<3x128x128xf32, #tpu.memory_space<vmem>>, %arg4: memref<1x64x128xf32, #tpu.memory_space<vmem>>) attributes {dimension_semantics = [#tpu.dimension_semantics<parallel>], iteration_bounds = array<i64: 2>, scalar_prefetch = 0 : i64, scratch_operands = 0 : i64, tpu.core_type = #tpu.core_type<tc>, window_params = [{transform_indices = @transform_0, window_bounds = array<i64: 1, 3, 64, 128>}, {pipeline_mode = #tpu.pipeline_mode<synchronous>, transform_indices = @transform_1, window_bounds = array<i64: 128, 128>}, {pipeline_mode = #tpu.pipeline_mode<synchronous>, transform_indices = @transform_2, window_bounds = array<i64: 3, 128, 128>}, {transform_indices = @transform_3, window_bounds = array<i64: 1, 64, 128>}]} {
    %c0 = arith.constant 0 : index
    %c0_0 = arith.constant 0 : index
    %c0_1 = arith.constant 0 : index
    %c0_2 = arith.constant 0 : index
    %0 = vector.load %arg1[%c0, %c0_0, %c0_1, %c0_2] : memref<1x3x64x128xf32, #tpu.memory_space<vmem>>, vector<1x1x64x128xf32>
    %1 = vector.shape_cast %0 : vector<1x1x64x128xf32> to vector<64x128xf32>
    %c0_3 = arith.constant 0 : index
    %c1 = arith.constant 1 : index
    %c0_4 = arith.constant 0 : index
    %c0_5 = arith.constant 0 : index
    %2 = vector.load %arg1[%c0_3, %c1, %c0_4, %c0_5] : memref<1x3x64x128xf32, #tpu.memory_space<vmem>>, vector<1x1x64x128xf32>
    %3 = vector.shape_cast %2 : vector<1x1x64x128xf32> to vector<64x128xf32>
    %c0_6 = arith.constant 0 : index
    %c2 = arith.constant 2 : index
    %c0_7 = arith.constant 0 : index
    %c0_8 = arith.constant 0 : index
    %4 = vector.load %arg1[%c0_6, %c2, %c0_7, %c0_8] : memref<1x3x64x128xf32, #tpu.memory_space<vmem>>, vector<1x1x64x128xf32>
    %5 = vector.shape_cast %4 : vector<1x1x64x128xf32> to vector<64x128xf32>
    %6 = arith.addf %1, %3 : vector<64x128xf32>
    %7 = arith.addf %6, %5 : vector<64x128xf32>
    %cst = arith.constant dense<0.000000e+00> : vector<128xf32>
    %8 = vector.multi_reduction <add>, %7, %cst [0] : vector<64x128xf32> to vector<128xf32>
    %9 = vector.shape_cast %8 : vector<128xf32> to vector<1x128xf32>
    %c0_9 = arith.constant 0 : index
    %c0_10 = arith.constant 0 : index
    %10 = vector.load %arg2[%c0_9, %c0_10] : memref<128x128xf32, #tpu.memory_space<vmem>>, vector<128x128xf32>
    %cst_11 = arith.constant dense<0.000000e+00> : vector<1x128xf32>
    %11 = tpu.matmul %9, %10, %cst_11 {dimension_numbers = #tpu.dot_dimension_numbers<[1], [0], [0], [1], [0, 0, 1, 1], [], []>} : vector<1x128xf32>, vector<128x128xf32>, vector<1x128xf32> -> vector<1x128xf32>
    %cst_12 = arith.constant 5.000000e-01 : f32
    %12 = vector.broadcast %cst_12 : f32 to vector<1x128xf32>
    %13 = arith.mulf %12, %11 : vector<1x128xf32>
    %cst_13 = arith.constant 4.471500e-02 : f32
    %14 = vector.broadcast %cst_13 : f32 to vector<1x128xf32>
    %15 = arith.mulf %14, %11 : vector<1x128xf32>
    %16 = arith.mulf %15, %11 : vector<1x128xf32>
    %17 = arith.mulf %16, %11 : vector<1x128xf32>
    %18 = arith.addf %11, %17 : vector<1x128xf32>
    %cst_14 = arith.constant 0.797884583 : f32
    %19 = vector.broadcast %cst_14 : f32 to vector<1x128xf32>
    %20 = arith.mulf %19, %18 : vector<1x128xf32>
    %21 = math.tanh %20 : vector<1x128xf32>
    %cst_15 = arith.constant 1.000000e+00 : f32
    %22 = vector.broadcast %cst_15 : f32 to vector<1x128xf32>
    %23 = arith.addf %22, %21 : vector<1x128xf32>
    %24 = arith.mulf %13, %23 : vector<1x128xf32>
    %c0_16 = arith.constant 0 : index
    %c0_17 = arith.constant 0 : index
    %c0_18 = arith.constant 0 : index
    %25 = vector.load %arg3[%c0_16, %c0_17, %c0_18] : memref<3x128x128xf32, #tpu.memory_space<vmem>>, vector<1x128x128xf32>
    %26 = vector.shape_cast %25 : vector<1x128x128xf32> to vector<128x128xf32>
    %cst_19 = arith.constant dense<0.000000e+00> : vector<1x128xf32>
    %27 = tpu.matmul %24, %26, %cst_19 {dimension_numbers = #tpu.dot_dimension_numbers<[1], [0], [0], [1], [0, 0, 1, 1], [], []>} : vector<1x128xf32>, vector<128x128xf32>, vector<1x128xf32> -> vector<1x128xf32>
    %c1_20 = arith.constant 1 : index
    %c0_21 = arith.constant 0 : index
    %c0_22 = arith.constant 0 : index
    %28 = vector.load %arg3[%c1_20, %c0_21, %c0_22] : memref<3x128x128xf32, #tpu.memory_space<vmem>>, vector<1x128x128xf32>
    %29 = vector.shape_cast %28 : vector<1x128x128xf32> to vector<128x128xf32>
    %cst_23 = arith.constant dense<0.000000e+00> : vector<1x128xf32>
    %30 = tpu.matmul %24, %29, %cst_23 {dimension_numbers = #tpu.dot_dimension_numbers<[1], [0], [0], [1], [0, 0, 1, 1], [], []>} : vector<1x128xf32>, vector<128x128xf32>, vector<1x128xf32> -> vector<1x128xf32>
    %c2_24 = arith.constant 2 : index
    %c0_25 = arith.constant 0 : index
    %c0_26 = arith.constant 0 : index
    %31 = vector.load %arg3[%c2_24, %c0_25, %c0_26] : memref<3x128x128xf32, #tpu.memory_space<vmem>>, vector<1x128x128xf32>
    %32 = vector.shape_cast %31 : vector<1x128x128xf32> to vector<128x128xf32>
    %cst_27 = arith.constant dense<0.000000e+00> : vector<1x128xf32>
    %33 = tpu.matmul %24, %32, %cst_27 {dimension_numbers = #tpu.dot_dimension_numbers<[1], [0], [0], [1], [0, 0, 1, 1], [], []>} : vector<1x128xf32>, vector<128x128xf32>, vector<1x128xf32> -> vector<1x128xf32>
    %34 = arith.maximumf %27, %30 : vector<1x128xf32>
    %35 = arith.maximumf %34, %33 : vector<1x128xf32>
    %36 = arith.subf %27, %35 : vector<1x128xf32>
    %37 = math.exp %36 : vector<1x128xf32>
    %38 = arith.subf %30, %35 : vector<1x128xf32>
    %39 = math.exp %38 : vector<1x128xf32>
    %40 = arith.subf %33, %35 : vector<1x128xf32>
    %41 = math.exp %40 : vector<1x128xf32>
    %42 = arith.addf %37, %39 : vector<1x128xf32>
    %43 = arith.addf %42, %41 : vector<1x128xf32>
    %cst_28 = arith.constant 1.000000e+00 : f32
    %44 = vector.broadcast %cst_28 : f32 to vector<1x128xf32>
    %45 = arith.divf %44, %43 : vector<1x128xf32>
    %46 = arith.mulf %37, %45 : vector<1x128xf32>
    %47 = vector.broadcast %46 : vector<1x128xf32> to vector<64x128xf32>
    %48 = arith.mulf %47, %1 : vector<64x128xf32>
    %49 = arith.mulf %39, %45 : vector<1x128xf32>
    %50 = vector.broadcast %49 : vector<1x128xf32> to vector<64x128xf32>
    %51 = arith.mulf %50, %3 : vector<64x128xf32>
    %52 = arith.addf %48, %51 : vector<64x128xf32>
    %53 = arith.mulf %41, %45 : vector<1x128xf32>
    %54 = vector.broadcast %53 : vector<1x128xf32> to vector<64x128xf32>
    %55 = arith.mulf %54, %5 : vector<64x128xf32>
    %56 = arith.addf %52, %55 : vector<64x128xf32>
    %c0_29 = arith.constant 0 : index
    %c0_30 = arith.constant 0 : index
    %c0_31 = arith.constant 0 : index
    %57 = vector.load %arg4[%c0_29, %c0_30, %c0_31] : memref<1x64x128xf32, #tpu.memory_space<vmem>>, vector<1x64x128xf32>
    %58 = vector.shape_cast %57 : vector<1x64x128xf32> to vector<64x128xf32>
    %59 = vector.shape_cast %56 : vector<64x128xf32> to vector<1x64x128xf32>
    tpu.vector_store %arg4[%c0_29, %c0_30, %c0_31], %59 {strides = array<i32>} : memref<1x64x128xf32, #tpu.memory_space<vmem>>, vector<1x64x128xf32>,
    return
  }
  func.func @transform_0(%arg0: i32) -> (i32, i32, i32, i32) {
    %c0_i32 = arith.constant 0 : i32
    %c0_i32_0 = arith.constant 0 : i32
    %c0_i32_1 = arith.constant 0 : i32
    %c0_i32_2 = arith.constant 0 : i32
    return %arg0, %c0_i32, %c0_i32_0, %c0_i32_1 : i32, i32, i32, i32
  }
  func.func @transform_1(%arg0: i32) -> (i32, i32) {
    %c0_i32 = arith.constant 0 : i32
    %c0_i32_0 = arith.constant 0 : i32
    %c0_i32_1 = arith.constant 0 : i32
    return %c0_i32, %c0_i32_0 : i32, i32
  }
  func.func @transform_2(%arg0: i32) -> (i32, i32, i32) {
    %c0_i32 = arith.constant 0 : i32
    %c0_i32_0 = arith.constant 0 : i32
    %c0_i32_1 = arith.constant 0 : i32
    %c0_i32_2 = arith.constant 0 : i32
    return %c0_i32, %c0_i32_0, %c0_i32_1 : i32, i32, i32
  }
  func.func @transform_3(%arg0: i32) -> (i32, i32, i32) {
    %c0_i32 = arith.constant 0 : i32
    %c0_i32_0 = arith.constant 0 : i32
    %c0_i32_1 = arith.constant 0 : i32
    return %arg0, %c0_i32, %c0_i32_0 : i32, i32, i32
  }
}

</mosaic_0001>

<llo_original>
// kernel: split_attention.1
$region0: #{split_attention.1}
  #allocation0 [shape = 'u32[]', space=smem, size = 0x4, offset = 0x4, fixed_abs, tag = 'smem constant byte address 0x4 - core index']
  #allocation1 [shape = 'u32[144,128]{1,0:T(1,128)}', space=vmem, size = 0x12000, scoped, tag = 'internal scratch']
  %s0 = inlined_call_operand.vmem [shape: f32[2,3,64,128], index: 0, kind: input, shape index: {}]
  %s1 = inlined_call_operand.vmem [shape: f32[128,128], index: 1, kind: input, shape index: {}]
  %s2 = inlined_call_operand.vmem [shape: f32[3,128,128], index: 2, kind: input, shape index: {}]
  %s3 = inlined_call_operand.hbm [shape: f32[2,64,128], index: 3, kind: output, shape index: {}]
  %s4 = sld [smem:[#allocation0]]
  $region45: #{split_attention.1} parent=0
    _
  %s6 = ssub.s32 1, %s4
  %s7 = scalar_select 0, %s6, %s4
  $region1: #{split_attention.1} parent=0
    #allocation2 [shape = 'u8[65536]{0}', space=vmem, size = 0x10000, scoped, tag = 'output window, operand 0']
    #allocation3 [shape = 's32[2]{0}', space=sflag, size = 0x8, scoped, tag = 'scoped memory for split_attention.1']
    %8 = vsyncpa [#allocation3], 0
    %s9 = scalar_lea.sflag [#allocation3], 1
    %10 = vsyncpa %s9, 0
    loop: start=0, step=1, limit=4
    $region2: #{split_attention.1} parent=1 // loop_pre_header
      _
    $region3: #{split_attention.1} parent=1 // loop_header
      %s12 = sphi 0, %s16
      %p13 = scmp.ge.s32.totalorder %s12, 4
      %s22 = sphi 0, %s24
      %s25 = sphi 0, %s22
      %s26 = sphi 0, %s25
      %s42 = sphi 0, %s26
      %s46 = sphi 0, %s46
      %s48 = sphi 0, %s46
      %s49 = sphi 0, %s48
      %s63 = sphi 0, %s49
      %s67 = sphi 0, %s67
      %s69 = sphi 0, %s67
      %s70 = sphi 0, %s69
      %s84 = sphi 0, %s70
      %s90 = sphi 0, %s92
      %s93 = sphi 0, %s90
      %s94 = sphi 0, %s93
      %s110 = sphi 0, %s94
    $region4: #{split_attention.1} parent=1 // loop_header_branch
      %15 = sbr.rel (%p13) target = $region8
    $region5: #{split_attention.1} parent=1 // loop_body
      %s17 = ssub.s32 %s12, 1
      %s18 = ssub.s32 %s12, 2
      %s19 = sadd.s32 %s12, 1
      %s20 = ssub.s32 %s12, %s19
      %p21 = scmp.eq.s32.totalorder %s20, 0
      %s23 = sadd.s32 %s22, 1
      %s24 = scalar_select %p21, %s22, %s23
      %p27 = pneg %p21
      %p28 = scmp.eq.s32.totalorder %s12, 1
      %p29 = por %p27, %p28
      %p30 = scmp.ne.s32.totalorder %s22, %s25
      %p31 = scmp.eq.s32.totalorder %s12, 0
      %p32 = por %p30, %p31
      %p33 = scmp.ne.s32.totalorder %s22, %s25
      %p34 = scmp.eq.s32.totalorder %s17, 1
      %p35 = por %p33, %p34
      %p36 = scmp.ne.s32.totalorder %s25, %s26
      %p37 = scmp.eq.s32.totalorder %s17, 0
      %p38 = por %p36, %p37
      %p39 = scmp.ne.s32.totalorder %s25, %s26
      %p40 = scmp.eq.s32.totalorder %s18, 1
      %p41 = por %p39, %p40
      %p43 = scmp.ne.s32.totalorder %s26, %s42
      %p44 = scmp.eq.s32.totalorder %s18, 0
      %p45 = por %p43, %p44
      %s47 = sadd.s32 %s46, 1
      %p50 = scmp.eq.s32.totalorder %s12, 1
      %p51 = scmp.ne.s32.totalorder %s46, %s48
      %p52 = scmp.eq.s32.totalorder %s12, 0
      %p53 = por %p51, %p52
      %p54 = scmp.ne.s32.totalorder %s46, %s48
      %p55 = scmp.eq.s32.totalorder %s17, 1
      %p56 = por %p54, %p55
      %p57 = scmp.ne.s32.totalorder %s48, %s49
      %p58 = scmp.eq.s32.totalorder %s17, 0
      %p59 = por %p57, %p58
      %p60 = scmp.ne.s32.totalorder %s48, %s49
      %p61 = scmp.eq.s32.totalorder %s18, 1
      %p62 = por %p60, %p61
      %p64 = scmp.ne.s32.totalorder %s49, %s63
      %p65 = scmp.eq.s32.totalorder %s18, 0
      %p66 = por %p64, %p65
      %s68 = sadd.s32 %s67, 1
      %p71 = scmp.eq.s32.totalorder %s12, 1
      %p72 = scmp.ne.s32.totalorder %s67, %s69
      %p73 = scmp.eq.s32.totalorder %s12, 0
      %p74 = por %p72, %p73
      %p75 = scmp.ne.s32.totalorder %s67, %s69
      %p76 = scmp.eq.s32.totalorder %s17, 1
      %p77 = por %p75, %p76
      %p78 = scmp.ne.s32.totalorder %s69, %s70
      %p79 = scmp.eq.s32.totalorder %s17, 0
      %p80 = por %p78, %p79
      %p81 = scmp.ne.s32.totalorder %s69, %s70
      %p82 = scmp.eq.s32.totalorder %s18, 1
      %p83 = por %p81, %p82
      %p85 = scmp.ne.s32.totalorder %s70, %s84
      %p86 = scmp.eq.s32.totalorder %s18, 0
      %p87 = por %p85, %p86
      %s88 = ssub.s32 %s12, %s19
      %p89 = scmp.eq.s32.totalorder %s88, 0
      %s91 = sadd.s32 %s90, 1
      %s92 = scalar_select %p89, %s90, %s91
      %p95 = pneg %p89
      %p96 = scmp.eq.s32.totalorder %s12, 1
      %p97 = por %p95, %p96
      %p98 = scmp.ne.s32.totalorder %s90, %s93
      %p99 = scmp.eq.s32.totalorder %s12, 0
      %p100 = por %p98, %p99
      %p101 = scmp.ne.s32.totalorder %s90, %s93
      %p102 = scmp.eq.s32.totalorder %s17, 1
      %p103 = por %p101, %p102
      %p104 = scmp.ne.s32.totalorder %s93, %s94
      %p105 = scmp.eq.s32.totalorder %s17, 0
      %p106 = por %p104, %p105
      %p107 = scmp.ne.s32.totalorder %s93, %s94
      %p108 = scmp.eq.s32.totalorder %s18, 1
      %p109 = por %p107, %p108
      %p111 = scmp.ne.s32.totalorder %s94, %s110
      %p112 = scmp.eq.s32.totalorder %s18, 0
      %p113 = por %p111, %p112
      %p114 = scmp.le.s32.totalorder 1, %s12
      %p115 = scmp.lt.s32.totalorder %s12, 3
      %p116 = pnand %p114, %p115
      %p117 = pneg %p116
      // Predicated region
      $region9: #{split_attention.1} parent=5 // pred_check
        _
      $region10: #{split_attention.1} parent=5 // pred_check_branch
        %119 = sbr.rel (%p116) target = $region12
      $region11: #{split_attention.1} parent=5 // pred_region
        %s120 = ssub.s32 %s12, 1
        // Predicated region
        $region13: #{split_attention.1} parent=11 // pred_check
          %p121 = pneg %p59
        $region14: #{split_attention.1} parent=11 // pred_check_branch
          %123 = sbr.rel (%p121) target = $region16
        $region15: #{split_attention.1} parent=11 // pred_region
          _
        $region16: #{split_attention.1} parent=11 // pred_fallthru
          _
        // Predicated region
        $region17: #{split_attention.1} parent=11 // pred_check
          %p124 = pneg %p80
        $region18: #{split_attention.1} parent=11 // pred_check_branch
          %126 = sbr.rel (%p124) target = $region20
        $region19: #{split_attention.1} parent=11 // pred_region
          _
        $region20: #{split_attention.1} parent=11 // pred_fallthru
          _
      $region12: #{split_attention.1} parent=5 // pred_fallthru
        _
      %p127 = scmp.lt.s32.totalorder %s12, 2
      // Predicated region
      $region21: #{split_attention.1} parent=5 // pred_check
        %p128 = pneg %p127
      $region22: #{split_attention.1} parent=5 // pred_check_branch
        %130 = sbr.rel (%p128) target = $region24
      $region23: #{split_attention.1} parent=5 // pred_region
        // Predicated region
        $region25: #{split_attention.1} parent=23 // pred_check
          %p131 = pneg %p32
        $region26: #{split_attention.1} parent=23 // pred_check_branch
          %133 = sbr.rel (%p131) target = $region28
        $region27: #{split_attention.1} parent=23 // pred_region
          %p134 = scmp.lt.s32.totalorder %s12, 1
          %s135 = scalar_select %p134, %s12, 1
          %s136 = smul.addr %s135, 24
          %s137 = smul.addr %s136, 8
          %s138 = scalar_lea.vmem %s0, %s137
        $region28: #{split_attention.1} parent=23 // pred_fallthru
          _
      $region24: #{split_attention.1} parent=5 // pred_fallthru
        _
      %p139 = scmp.le.s32.totalorder 1, %s12
      %p140 = scmp.lt.s32.totalorder %s12, 3
      %p141 = pnand %p139, %p140
      %p142 = pneg %p141
      // Predicated region
      $region29: #{split_attention.1} parent=5 // pred_check
        _
      $region30: #{split_attention.1} parent=5 // pred_check_branch
        %144 = sbr.rel (%p141) target = $region32
      $region31: #{split_attention.1} parent=5 // pred_region
        %s145 = ssub.s32 %s12, 1
        %p146 = scmp.lt.s32.totalorder %s17, 1
        %s147 = scalar_select %p146, %s17, 1
        %s148 = smul.addr %s147, 24
        %s149 = smul.addr %s148, 8
        %s150 = scalar_lea.vmem %s0, %s149
        %p151 = pneg %p38
        %p152 = pneg %p35
        %p153 = pneg %p59
        %p154 = pneg %p56
        %p155 = pneg %p80
        %p156 = pneg %p77
        %p157 = pneg %p106
        %p158 = pneg %p103
        %s159 = sand.u32 %s93, 1
        %s160 = scalar_lea.sflag [#allocation3], %s159
        %s161 = sand.u32 %s93, 1
        %s162 = smul.addr %s161, 64
        %s163 = scalar_lea.vmem [#allocation2], %s162
        %p164 = scmp.lt.s32.totalorder %s17, 1
        %s165 = scalar_select %p164, %s17, 1
        %s166 = smul.addr %s165, 24
        %s167 = smul.addr %s166, 8
        %s168 = scalar_lea.vmem %s0, %s167
        %v169 = vld [vmem:[%s168] sm:$0xff]
        %v170 = vld [vmem:[%s168 + $0x8] sm:$0xff]
        %v171 = vld [vmem:[%s168 + $0x10] sm:$0xff]
        %v172 = vld [vmem:[%s168 + $0x18] sm:$0xff]
        %v173 = vld [vmem:[%s168 + $0x20] sm:$0xff]
        %v174 = vld [vmem:[%s168 + $0x28] sm:$0xff]
        %v175 = vld [vmem:[%s168 + $0x30] sm:$0xff]
        %v176 = vld [vmem:[%s168 + $0x38] sm:$0xff]
        %s177 = scalar_lea.vmem %s168, 64
        %v178 = vld [vmem:[%s177] sm:$0xff]
        %v179 = vld [vmem:[%s177 + $0x8] sm:$0xff]
        %v180 = vld [vmem:[%s177 + $0x10] sm:$0xff]
        %v181 = vld [vmem:[%s177 + $0x18] sm:$0xff]
        %v182 = vld [vmem:[%s177 + $0x20] sm:$0xff]
        %v183 = vld [vmem:[%s177 + $0x28] sm:$0xff]
        %v184 = vld [vmem:[%s177 + $0x30] sm:$0xff]
        %v185 = vld [vmem:[%s177 + $0x38] sm:$0xff]
        %s186 = scalar_lea.vmem %s168, 128
        %v187 = vld [vmem:[%s186] sm:$0xff]
        %v188 = vld [vmem:[%s186 + $0x8] sm:$0xff]
        %v189 = vld [vmem:[%s186 + $0x10] sm:$0xff]
        %v190 = vld [vmem:[%s186 + $0x18] sm:$0xff]
        %v191 = vld [vmem:[%s186 + $0x20] sm:$0xff]
        %v192 = vld [vmem:[%s186 + $0x28] sm:$0xff]
        %v193 = vld [vmem:[%s186 + $0x30] sm:$0xff]
        %v194 = vld [vmem:[%s186 + $0x38] sm:$0xff]
        %v195 = vadd.f32 %v169, %v178
        %v196 = vadd.f32 %v170, %v179
        %v197 = vadd.f32 %v171, %v180
        %v198 = vadd.f32 %v172, %v181
        %v199 = vadd.f32 %v173, %v182
        %v200 = vadd.f32 %v174, %v183
        %v201 = vadd.f32 %v175, %v184
        %v202 = vadd.f32 %v176, %v185
        %v203 = vadd.f32 %v195, %v187
        %v204 = vadd.f32 %v196, %v188
        %v205 = vadd.f32 %v197, %v189
        %v206 = vadd.f32 %v198, %v190
        %v207 = vadd.f32 %v199, %v191
        %v208 = vadd.f32 %v200, %v192
        %v209 = vadd.f32 %v201, %v193
        %v210 = vadd.f32 %v202, %v194
        %v211 = vadd.f32 %v203, %v204
        %v212 = vadd.f32 %v211, %v205
        %v213 = vadd.f32 %v212, %v206
        %v214 = vadd.f32 %v213, %v207
        %v215 = vadd.f32 %v214, %v208
        %v216 = vadd.f32 %v215, %v209
        %v217 = vadd.f32 %v216, %v210
        %v218 = vrot.slane %v217, 4
        %v219 = vadd.f32 %v217, %v218
        %v220 = vrot.slane %v219, 2
        %v221 = vadd.f32 %v219, %v220
        %v222 = vrot.slane %v221, 1
        %v223 = vadd.f32 %v221, %v222
        %v224 = vld [vmem:[%s1] sm:$0xff]
        %v225 = vld [vmem:[%s1 + $0x8] sm:$0xff]
        %v226 = vld [vmem:[%s1 + $0x10] sm:$0xff]
        %v227 = vld [vmem:[%s1 + $0x18] sm:$0xff]
        %v228 = vld [vmem:[%s1 + $0x20] sm:$0xff]
        %v229 = vld [vmem:[%s1 + $0x28] sm:$0xff]
        %v230 = vld [vmem:[%s1 + $0x30] sm:$0xff]
        %v231 = vld [vmem:[%s1 + $0x38] sm:$0xff]
        %v232 = vld [vmem:[%s1 + $0x40] sm:$0xff]
        %v233 = vld [vmem:[%s1 + $0x48] sm:$0xff]
        %v234 = vld [vmem:[%s1 + $0x50] sm:$0xff]
        %v235 = vld [vmem:[%s1 + $0x58] sm:$0xff]
        %v236 = vld [vmem:[%s1 + $0x60] sm:$0xff]
        %v237 = vld [vmem:[%s1 + $0x68] sm:$0xff]
        %v238 = vld [vmem:[%s1 + $0x70] sm:$0xff]
        %v239 = vld [vmem:[%s1 + $0x78] sm:$0xff]
        %240 = vmatprep.subr.mxu0 0.0
        %241 = vmatpush1.msra.mxu0 %v224
        %242 = vmatprep.subr.mxu0 0.0
        %243 = vmatpush1.msra.mxu0 %v225
        %244 = vmatprep.subr.mxu0 0.0
        %245 = vmatpush1.msra.mxu0 %v226
        %246 = vmatprep.subr.mxu0 0.0
        %247 = vmatpush1.msra.mxu0 %v227
        %248 = vmatprep.subr.mxu0 0.0
        %249 = vmatpush1.msra.mxu0 %v228
        %250 = vmatprep.subr.mxu0 0.0
        %251 = vmatpush1.msra.mxu0 %v229
        %252 = vmatprep.subr.mxu0 0.0
        %253 = vmatpush1.msra.mxu0 %v230
        %254 = vmatprep.subr.mxu0 0.0
        %255 = vmatpush1.msra.mxu0 %v231
        %256 = vmatprep.subr.mxu0 0.0
        %257 = vmatpush1.msra.mxu0 %v232
        %258 = vmatprep.subr.mxu0 0.0
        %259 = vmatpush1.msra.mxu0 %v233
        %260 = vmatprep.subr.mxu0 0.0
        %261 = vmatpush1.msra.mxu0 %v234
        %262 = vmatprep.subr.mxu0 0.0
        %263 = vmatpush1.msra.mxu0 %v235
        %264 = vmatprep.subr.mxu0 0.0
        %265 = vmatpush1.msra.mxu0 %v236
        %266 = vmatprep.subr.mxu0 0.0
        %267 = vmatpush1.msra.mxu0 %v237
        %268 = vmatprep.subr.mxu0 0.0
        %269 = vmatpush1.msra.mxu0 %v238
        %270 = vmatprep.subr.mxu0 0.0
        %271 = vmatpush1.msra.mxu0 %v239
        %272 = vmatprep.subr.mxu0 0.0
        %273 = vmatpush1.msra.mxu0 0.0
        %274 = vmatprep.subr.mxu0 0.0
        %275 = vmatpush1.msra.mxu0 0.0
        %276 = vmatprep.subr.mxu0 0.0
        %277 = vmatpush1.msra.mxu0 0.0
        %278 = vmatprep.subr.mxu0 0.0
        %279 = vmatpush1.msra.mxu0 0.0
        %280 = vmatprep.subr.mxu0 0.0
        %281 = vmatpush1.msra.mxu0 0.0
        %282 = vmatprep.subr.mxu0 0.0
        %283 = vmatpush1.msra.mxu0 0.0
        %284 = vmatprep.subr.mxu0 0.0
        %285 = vmatpush1.msra.mxu0 0.0
        %286 = vmatprep.subr.mxu0 0.0
        %287 = vmatpush1.msra.mxu0 0.0
        %288 = vmatprep.subr.mxu0 0.0
        %289 = vmatpush1.msra.mxu0 0.0
        %290 = vmatprep.subr.mxu0 0.0
        %291 = vmatpush1.msra.mxu0 0.0
        %292 = vmatprep.subr.mxu0 0.0
        %293 = vmatpush1.msra.mxu0 0.0
        %294 = vmatprep.subr.mxu0 0.0
        %295 = vmatpush1.msra.mxu0 0.0
        %296 = vmatprep.subr.mxu0 0.0
        %297 = vmatpush1.msra.mxu0 0.0
        %298 = vmatprep.subr.mxu0 0.0
        %299 = vmatpush1.msra.mxu0 0.0
        %300 = vmatprep.subr.mxu0 0.0
        %301 = vmatpush1.msra.mxu0 0.0
        %302 = vmatprep.subr.mxu0 0.0
        %303 = vmatpush1.msra.mxu0 0.0
        %304 = vmatprep.mubr.f32.mxu0 0.0
        %305 = vmatmul.mubr.f32.gmra.mrb[0].mxu0 %v223
        %v306 = vpop.f32.mrb[0].mxu0
        %v307 = vadd.f32 0.0, %v306
        %v308 = vpop.f32.mrb[0].mxu0
        %309 = vdwg.mxu0
        %v310 = vmul.f32 %v307, 0.5
        %v311 = vmul.f32 %v307, 0.044715
        %v312 = vmul.f32 %v311, %v307
        %v313 = vmul.f32 %v312, %v307
        %v314 = vadd.f32 %v307, %v313
        %v315 = vmul.f32 %v314, 0.7978846
        %v316 = vtanh.pop %v315
        %v317 = vadd.f32 %v316, 1.0
        %v318 = vmul.f32 %v310, %v317
        %v319 = vld [vmem:[%s2] sm:$0xff]
        %v320 = vld [vmem:[%s2 + $0x8] sm:$0xff]
        %v321 = vld [vmem:[%s2 + $0x10] sm:$0xff]
        %v322 = vld [vmem:[%s2 + $0x18] sm:$0xff]
        %v323 = vld [vmem:[%s2 + $0x20] sm:$0xff]
        %v324 = vld [vmem:[%s2 + $0x28] sm:$0xff]
        %v325 = vld [vmem:[%s2 + $0x30] sm:$0xff]
        %v326 = vld [vmem:[%s2 + $0x38] sm:$0xff]
        %v327 = vld [vmem:[%s2 + $0x40] sm:$0xff]
        %v328 = vld [vmem:[%s2 + $0x48] sm:$0xff]
        %v329 = vld [vmem:[%s2 + $0x50] sm:$0xff]
        %v330 = vld [vmem:[%s2 + $0x58] sm:$0xff]
        %v331 = vld [vmem:[%s2 + $0x60] sm:$0xff]
        %v332 = vld [vmem:[%s2 + $0x68] sm:$0xff]
        %v333 = vld [vmem:[%s2 + $0x70] sm:$0xff]
        %v334 = vld [vmem:[%s2 + $0x78] sm:$0xff]
        %335 = vmatprep.subr.mxu0 0.0
        %336 = vmatpush1.msra.mxu0 %v319
        %337 = vmatprep.subr.mxu0 0.0
        %338 = vmatpush1.msra.mxu0 %v320
        %339 = vmatprep.subr.mxu0 0.0
        %340 = vmatpush1.msra.mxu0 %v321
        %341 = vmatprep.subr.mxu0 0.0
        %342 = vmatpush1.msra.mxu0 %v322
        %343 = vmatprep.subr.mxu0 0.0
        %344 = vmatpush1.msra.mxu0 %v323
        %345 = vmatprep.subr.mxu0 0.0
        %346 = vmatpush1.msra.mxu0 %v324
        %347 = vmatprep.subr.mxu0 0.0
        %348 = vmatpush1.msra.mxu0 %v325
        %349 = vmatprep.subr.mxu0 0.0
        %350 = vmatpush1.msra.mxu0 %v326
        %351 = vmatprep.subr.mxu0 0.0
        %352 = vmatpush1.msra.mxu0 %v327
        %353 = vmatprep.subr.mxu0 0.0
        %354 = vmatpush1.msra.mxu0 %v328
        %355 = vmatprep.subr.mxu0 0.0
        %356 = vmatpush1.msra.mxu0 %v329
        %357 = vmatprep.subr.mxu0 0.0
        %358 = vmatpush1.msra.mxu0 %v330
        %359 = vmatprep.subr.mxu0 0.0
        %360 = vmatpush1.msra.mxu0 %v331
        %361 = vmatprep.subr.mxu0 0.0
        %362 = vmatpush1.msra.mxu0 %v332
        %363 = vmatprep.subr.mxu0 0.0
        %364 = vmatpush1.msra.mxu0 %v333
        %365 = vmatprep.subr.mxu0 0.0
        %366 = vmatpush1.msra.mxu0 %v334
        %367 = vmatprep.subr.mxu0 0.0
        %368 = vmatpush1.msra.mxu0 0.0
        %369 = vmatprep.subr.mxu0 0.0
        %370 = vmatpush1.msra.mxu0 0.0
        %371 = vmatprep.subr.mxu0 0.0
        %372 = vmatpush1.msra.mxu0 0.0
        %373 = vmatprep.subr.mxu0 0.0
        %374 = vmatpush1.msra.mxu0 0.0
        %375 = vmatprep.subr.mxu0 0.0
        %376 = vmatpush1.msra.mxu0 0.0
        %377 = vmatprep.subr.mxu0 0.0
        %378 = vmatpush1.msra.mxu0 0.0
        %379 = vmatprep.subr.mxu0 0.0
        %380 = vmatpush1.msra.mxu0 0.0
        %381 = vmatprep.subr.mxu0 0.0
        %382 = vmatpush1.msra.mxu0 0.0
        %383 = vmatprep.subr.mxu0 0.0
        %384 = vmatpush1.msra.mxu0 0.0
        %385 = vmatprep.subr.mxu0 0.0
        %386 = vmatpush1.msra.mxu0 0.0
        %387 = vmatprep.subr.mxu0 0.0
        %388 = vmatpush1.msra.mxu0 0.0
        %389 = vmatprep.subr.mxu0 0.0
        %390 = vmatpush1.msra.mxu0 0.0
        %391 = vmatprep.subr.mxu0 0.0
        %392 = vmatpush1.msra.mxu0 0.0
        %393 = vmatprep.subr.mxu0 0.0
        %394 = vmatpush1.msra.mxu0 0.0
        %395 = vmatprep.subr.mxu0 0.0
        %396 = vmatpush1.msra.mxu0 0.0
        %397 = vmatprep.subr.mxu0 0.0
        %398 = vmatpush1.msra.mxu0 0.0
        %399 = vmatprep.mubr.f32.mxu0 0.0
        %400 = vmatmul.mubr.f32.gmra.mrb[0].mxu0 %v318
        %v401 = vpop.f32.mrb[0].mxu0
        %v402 = vadd.f32 0.0, %v401
        %v403 = vpop.f32.mrb[0].mxu0
        %404 = vdwg.mxu0
        %s405 = scalar_lea.vmem %s2, 128
        %v406 = vld [vmem:[%s405] sm:$0xff]
        %v407 = vld [vmem:[%s405 + $0x8] sm:$0xff]
        %v408 = vld [vmem:[%s405 + $0x10] sm:$0xff]
        %v409 = vld [vmem:[%s405 + $0x18] sm:$0xff]
        %v410 = vld [vmem:[%s405 + $0x20] sm:$0xff]
        %v411 = vld [vmem:[%s405 + $0x28] sm:$0xff]
        %v412 = vld [vmem:[%s405 + $0x30] sm:$0xff]
        %v413 = vld [vmem:[%s405 + $0x38] sm:$0xff]
        %v414 = vld [vmem:[%s405 + $0x40] sm:$0xff]
        %v415 = vld [vmem:[%s405 + $0x48] sm:$0xff]
        %v416 = vld [vmem:[%s405 + $0x50] sm:$0xff]
        %v417 = vld [vmem:[%s405 + $0x58] sm:$0xff]
        %v418 = vld [vmem:[%s405 + $0x60] sm:$0xff]
        %v419 = vld [vmem:[%s405 + $0x68] sm:$0xff]
        %v420 = vld [vmem:[%s405 + $0x70] sm:$0xff]
        %v421 = vld [vmem:[%s405 + $0x78] sm:$0xff]
        %422 = vmatprep.subr.mxu0 0.0
        %423 = vmatpush1.msra.mxu0 %v406
        %424 = vmatprep.subr.mxu0 0.0
        %425 = vmatpush1.msra.mxu0 %v407
        %426 = vmatprep.subr.mxu0 0.0
        %427 = vmatpush1.msra.mxu0 %v408
        %428 = vmatprep.subr.mxu0 0.0
        %429 = vmatpush1.msra.mxu0 %v409
        %430 = vmatprep.subr.mxu0 0.0
        %431 = vmatpush1.msra.mxu0 %v410
        %432 = vmatprep.subr.mxu0 0.0
        %433 = vmatpush1.msra.mxu0 %v411
        %434 = vmatprep.subr.mxu0 0.0
        %435 = vmatpush1.msra.mxu0 %v412
        %436 = vmatprep.subr.mxu0 0.0
        %437 = vmatpush1.msra.mxu0 %v413
        %438 = vmatprep.subr.mxu0 0.0
        %439 = vmatpush1.msra.mxu0 %v414
        %440 = vmatprep.subr.mxu0 0.0
        %441 = vmatpush1.msra.mxu0 %v415
        %442 = vmatprep.subr.mxu0 0.0
        %443 = vmatpush1.msra.mxu0 %v416
        %444 = vmatprep.subr.mxu0 0.0
        %445 = vmatpush1.msra.mxu0 %v417
        %446 = vmatprep.subr.mxu0 0.0
        %447 = vmatpush1.msra.mxu0 %v418
        %448 = vmatprep.subr.mxu0 0.0
        %449 = vmatpush1.msra.mxu0 %v419
        %450 = vmatprep.subr.mxu0 0.0
        %451 = vmatpush1.msra.mxu0 %v420
        %452 = vmatprep.subr.mxu0 0.0
        %453 = vmatpush1.msra.mxu0 %v421
        %454 = vmatprep.subr.mxu0 0.0
        %455 = vmatpush1.msra.mxu0 0.0
        %456 = vmatprep.subr.mxu0 0.0
        %457 = vmatpush1.msra.mxu0 0.0
        %458 = vmatprep.subr.mxu0 0.0
        %459 = vmatpush1.msra.mxu0 0.0
        %460 = vmatprep.subr.mxu0 0.0
        %461 = vmatpush1.msra.mxu0 0.0
        %462 = vmatprep.subr.mxu0 0.0
        %463 = vmatpush1.msra.mxu0 0.0
        %464 = vmatprep.subr.mxu0 0.0
        %465 = vmatpush1.msra.mxu0 0.0
        %466 = vmatprep.subr.mxu0 0.0
        %467 = vmatpush1.msra.mxu0 0.0
        %468 = vmatprep.subr.mxu0 0.0
        %469 = vmatpush1.msra.mxu0 0.0
        %470 = vmatprep.subr.mxu0 0.0
        %471 = vmatpush1.msra.mxu0 0.0
        %472 = vmatprep.subr.mxu0 0.0
        %473 = vmatpush1.msra.mxu0 0.0
        %474 = vmatprep.subr.mxu0 0.0
        %475 = vmatpush1.msra.mxu0 0.0
        %476 = vmatprep.subr.mxu0 0.0
        %477 = vmatpush1.msra.mxu0 0.0
        %478 = vmatprep.subr.mxu0 0.0
        %479 = vmatpush1.msra.mxu0 0.0
        %480 = vmatprep.subr.mxu0 0.0
        %481 = vmatpush1.msra.mxu0 0.0
        %482 = vmatprep.subr.mxu0 0.0
        %483 = vmatpush1.msra.mxu0 0.0
        %484 = vmatprep.subr.mxu0 0.0
        %485 = vmatpush1.msra.mxu0 0.0
        %486 = vmatprep.mubr.f32.mxu0 0.0
        %487 = vmatmul.mubr.f32.gmra.mrb[0].mxu0 %v318
        %v488 = vpop.f32.mrb[0].mxu0
        %v489 = vadd.f32 0.0, %v488
        %v490 = vpop.f32.mrb[0].mxu0
        %491 = vdwg.mxu0
        %s492 = scalar_lea.vmem %s2, 256
        %v493 = vld [vmem:[%s492] sm:$0xff]
        %v494 = vld [vmem:[%s492 + $0x8] sm:$0xff]
        %v495 = vld [vmem:[%s492 + $0x10] sm:$0xff]
        %v496 = vld [vmem:[%s492 + $0x18] sm:$0xff]
        %v497 = vld [vmem:[%s492 + $0x20] sm:$0xff]
        %v498 = vld [vmem:[%s492 + $0x28] sm:$0xff]
        %v499 = vld [vmem:[%s492 + $0x30] sm:$0xff]
        %v500 = vld [vmem:[%s492 + $0x38] sm:$0xff]
        %v501 = vld [vmem:[%s492 + $0x40] sm:$0xff]
        %v502 = vld [vmem:[%s492 + $0x48] sm:$0xff]
        %v503 = vld [vmem:[%s492 + $0x50] sm:$0xff]
        %v504 = vld [vmem:[%s492 + $0x58] sm:$0xff]
        %v505 = vld [vmem:[%s492 + $0x60] sm:$0xff]
        %v506 = vld [vmem:[%s492 + $0x68] sm:$0xff]
        %v507 = vld [vmem:[%s492 + $0x70] sm:$0xff]
        %v508 = vld [vmem:[%s492 + $0x78] sm:$0xff]
        %509 = vmatprep.subr.mxu0 0.0
        %510 = vmatpush1.msra.mxu0 %v493
        %511 = vmatprep.subr.mxu0 0.0
        %512 = vmatpush1.msra.mxu0 %v494
        %513 = vmatprep.subr.mxu0 0.0
        %514 = vmatpush1.msra.mxu0 %v495
        %515 = vmatprep.subr.mxu0 0.0
        %516 = vmatpush1.msra.mxu0 %v496
        %517 = vmatprep.subr.mxu0 0.0
        %518 = vmatpush1.msra.mxu0 %v497
        %519 = vmatprep.subr.mxu0 0.0
        %520 = vmatpush1.msra.mxu0 %v498
        %521 = vmatprep.subr.mxu0 0.0
        %522 = vmatpush1.msra.mxu0 %v499
        %523 = vmatprep.subr.mxu0 0.0
        %524 = vmatpush1.msra.mxu0 %v500
        %525 = vmatprep.subr.mxu0 0.0
        %526 = vmatpush1.msra.mxu0 %v501
        %527 = vmatprep.subr.mxu0 0.0
        %528 = vmatpush1.msra.mxu0 %v502
        %529 = vmatprep.subr.mxu0 0.0
        %530 = vmatpush1.msra.mxu0 %v503
        %531 = vmatprep.subr.mxu0 0.0
        %532 = vmatpush1.msra.mxu0 %v504
        %533 = vmatprep.subr.mxu0 0.0
        %534 = vmatpush1.msra.mxu0 %v505
        %535 = vmatprep.subr.mxu0 0.0
        %536 = vmatpush1.msra.mxu0 %v506
        %537 = vmatprep.subr.mxu0 0.0
        %538 = vmatpush1.msra.mxu0 %v507
        %539 = vmatprep.subr.mxu0 0.0
        %540 = vmatpush1.msra.mxu0 %v508
        %541 = vmatprep.subr.mxu0 0.0
        %542 = vmatpush1.msra.mxu0 0.0
        %543 = vmatprep.subr.mxu0 0.0
        %544 = vmatpush1.msra.mxu0 0.0
        %545 = vmatprep.subr.mxu0 0.0
        %546 = vmatpush1.msra.mxu0 0.0
        %547 = vmatprep.subr.mxu0 0.0
        %548 = vmatpush1.msra.mxu0 0.0
        %549 = vmatprep.subr.mxu0 0.0
        %550 = vmatpush1.msra.mxu0 0.0
        %551 = vmatprep.subr.mxu0 0.0
        %552 = vmatpush1.msra.mxu0 0.0
        %553 = vmatprep.subr.mxu0 0.0
        %554 = vmatpush1.msra.mxu0 0.0
        %555 = vmatprep.subr.mxu0 0.0
        %556 = vmatpush1.msra.mxu0 0.0
        %557 = vmatprep.subr.mxu0 0.0
        %558 = vmatpush1.msra.mxu0 0.0
        %559 = vmatprep.subr.mxu0 0.0
        %560 = vmatpush1.msra.mxu0 0.0
        %561 = vmatprep.subr.mxu0 0.0
        %562 = vmatpush1.msra.mxu0 0.0
        %563 = vmatprep.subr.mxu0 0.0
        %564 = vmatpush1.msra.mxu0 0.0
        %565 = vmatprep.subr.mxu0 0.0
        %566 = vmatpush1.msra.mxu0 0.0
        %567 = vmatprep.subr.mxu0 0.0
        %568 = vmatpush1.msra.mxu0 0.0
        %569 = vmatprep.subr.mxu0 0.0
        %570 = vmatpush1.msra.mxu0 0.0
        %571 = vmatprep.subr.mxu0 0.0
        %572 = vmatpush1.msra.mxu0 0.0
        %573 = vmatprep.mubr.f32.mxu0 0.0
        %574 = vmatmul.mubr.f32.gmra.mrb[0].mxu0 %v318
        %v575 = vpop.f32.mrb[0].mxu0
        %v576 = vadd.f32 0.0, %v575
        %v577 = vpop.f32.mrb[0].mxu0
        %578 = vdwg.mxu0
        %v579 = vmax.f32 %v402, %v489
        %v580 = vmax.f32 %v579, %v576
        %v581 = vsub.f32 %v402, %v580
        %v582 = vmul.f32 %v581, 1.442695
        %v583 = vpow.pop %v582
        %v584 = vsub.f32 %v489, %v580
        %v585 = vmul.f32 %v584, 1.442695
        %v586 = vpow.pop %v585
        %v587 = vsub.f32 %v576, %v580
        %v588 = vmul.f32 %v587, 1.442695
        %v589 = vpow.pop %v588
        %v590 = vadd.f32 %v583, %v586
        %v591 = vadd.f32 %v590, %v589
        %v592 = vrcp.pop %v591
        %v593 = vmul.f32 1.0, %v592
        %v594 = vmul.f32 %v583, %v593
        %v595 = vlaneseq
        %v596 = vshrl.u32 %v595, 7
        %v597 = vsub.s32 0, %v596
        %v598 = vrot.slane %v594, %v597
        %v599 = vmul.f32 %v598, %v169
        %v600 = vmul.f32 %v598, %v170
        %v601 = vmul.f32 %v598, %v171
        %v602 = vmul.f32 %v598, %v172
        %v603 = vmul.f32 %v598, %v173
        %v604 = vmul.f32 %v598, %v174
        %v605 = vmul.f32 %v598, %v175
        %v606 = vmul.f32 %v598, %v176
        %v607 = vmul.f32 %v586, %v593
        %v608 = vlaneseq
        %v609 = vshrl.u32 %v608, 7
        %v610 = vsub.s32 0, %v609
        %v611 = vrot.slane %v607, %v610
        %v612 = vmul.f32 %v611, %v178
        %v613 = vmul.f32 %v611, %v179
        %v614 = vmul.f32 %v611, %v180
        %v615 = vmul.f32 %v611, %v181
        %v616 = vmul.f32 %v611, %v182
        %v617 = vmul.f32 %v611, %v183
        %v618 = vmul.f32 %v611, %v184
        %v619 = vmul.f32 %v611, %v185
        %v620 = vadd.f32 %v599, %v612
        %v621 = vadd.f32 %v600, %v613
        %v622 = vadd.f32 %v601, %v614
        %v623 = vadd.f32 %v602, %v615
        %v624 = vadd.f32 %v603, %v616
        %v625 = vadd.f32 %v604, %v617
        %v626 = vadd.f32 %v605, %v618
        %v627 = vadd.f32 %v606, %v619
        %v628 = vmul.f32 %v589, %v593
        %v629 = vlaneseq
        %v630 = vshrl.u32 %v629, 7
        %v631 = vsub.s32 0, %v630
        %v632 = vrot.slane %v628, %v631
        %v633 = vmul.f32 %v632, %v187
        %v634 = vmul.f32 %v632, %v188
        %v635 = vmul.f32 %v632, %v189
        %v636 = vmul.f32 %v632, %v190
        %v637 = vmul.f32 %v632, %v191
        %v638 = vmul.f32 %v632, %v192
        %v639 = vmul.f32 %v632, %v193
        %v640 = vmul.f32 %v632, %v194
        %v641 = vadd.f32 %v620, %v633
        %v642 = vadd.f32 %v621, %v634
        %v643 = vadd.f32 %v622, %v635
        %v644 = vadd.f32 %v623, %v636
        %v645 = vadd.f32 %v624, %v637
        %v646 = vadd.f32 %v625, %v638
        %v647 = vadd.f32 %v626, %v639
        %v648 = vadd.f32 %v627, %v640
        %649 = vst [vmem:[%s163] sm:$0xff] %v641
        %650 = vst [vmem:[%s163 + $0x8] sm:$0xff] %v642
        %651 = vst [vmem:[%s163 + $0x10] sm:$0xff] %v643
        %652 = vst [vmem:[%s163 + $0x18] sm:$0xff] %v644
        %653 = vst [vmem:[%s163 + $0x20] sm:$0xff] %v645
        %654 = vst [vmem:[%s163 + $0x28] sm:$0xff] %v646
        %655 = vst [vmem:[%s163 + $0x30] sm:$0xff] %v647
        %656 = vst [vmem:[%s163 + $0x38] sm:$0xff] %v648
        %s657 = sand.u32 %s93, 1
        %s658 = scalar_lea.sflag [#allocation3], %s657
        %s659 = sand.u32 %s93, 1
        %s660 = smul.addr %s659, 64
        %s661 = scalar_lea.vmem [#allocation2], %s660
        // Predicated region
        $region33: #{split_attention.1} parent=31 // pred_check
          %p662 = pneg %p103
        $region34: #{split_attention.1} parent=31 // pred_check_branch
          %664 = sbr.rel (%p662) target = $region36
        $region35: #{split_attention.1} parent=31 // pred_region
          %s666 = ssub.s32 1024, 1024
          %667 = vsyncadd %s658, %s666
          %s668 = smul.addr %s17, 8
          %s669 = smul.addr %s668, 128
          %s670 = scalar_lea.hbm %s3, %s669
          %s671 = sshll.u32 %s661, 4
          %s672 = int_to_ptr.vmem [resolvable:$true] %s671
          %677 = dma.vmem_to_hbm [thread:$0]  %s672, 1024, %s670, %s658, 128, 128, 8
        $region36: #{split_attention.1} parent=31 // pred_fallthru
          _
      $region32: #{split_attention.1} parent=5 // pred_fallthru
        _
      %p678 = scmp.le.s32.totalorder 2, %s12
      // Predicated region
      $region37: #{split_attention.1} parent=5 // pred_check
        %p679 = pneg %p678
      $region38: #{split_attention.1} parent=5 // pred_check_branch
        %681 = sbr.rel (%p679) target = $region40
      $region39: #{split_attention.1} parent=5 // pred_region
        %s682 = ssub.s32 %s12, 2
        // Predicated region
        $region41: #{split_attention.1} parent=39 // pred_check
          %p683 = pneg %p109
        $region42: #{split_attention.1} parent=39 // pred_check_branch
          %685 = sbr.rel (%p683) target = $region44
        $region43: #{split_attention.1} parent=39 // pred_region
          %s686 = sand.u32 %s94, 1
          %s687 = scalar_lea.sflag [#allocation3], %s686
          %s688 = sand.u32 %s94, 1
          %s689 = smul.addr %s688, 64
          %s690 = scalar_lea.vmem [#allocation2], %s689
          %691 = dma.done %s687, 1024
        $region44: #{split_attention.1} parent=39 // pred_fallthru
          _
      $region40: #{split_attention.1} parent=5 // pred_fallthru
        _
    $region6: #{split_attention.1} parent=1 // loop_footer
      %s16 = sadd.s32 1, %s12
    $region7: #{split_attention.1} parent=1 // loop_footer_branch
      %11 = sbr.rel target = $region3
    $region8: #{split_attention.1} parent=1 // loop_exit
      _
    %692 = vsyncpa [#allocation3], 1
    %s693 = scalar_lea.sflag [#allocation3], 1
    %694 = vsyncpa %s693, 1

</llo_original>
